<compile_context>
chip_gen: v6e
topology: v6e:2x2x1
jax: 0.10.0
libtpu: 0.0.40
codegen_flags: <defaults>
</compile_context>

<pallas_src>
import functools

import jax
import jax.numpy as jnp
from jax.experimental import pallas as pl
from jax.experimental.pallas import tpu as pltpu


def _round_up(x, m):
    return ((x + m - 1) // m) * m


def _ceil_div(a, b):
    return -(-a // b)


# ---------------------------------------------------------------------------------
# Kernels
# ---------------------------------------------------------------------------------
def _gated_dense_kernel_noacc(x_ref, wh_ref, wg_ref, bh_ref, bg_ref, o_ref, *, activation):
    """Single-K-step path: everything stays in vregs, one lane-dense store."""
    x = x_ref[...]
    h = jnp.dot(x, wh_ref[...], preferred_element_type=jnp.float32)
    g = jnp.dot(x, wg_ref[...], preferred_element_type=jnp.float32)
    h = h + bh_ref[...].astype(jnp.float32)
    g = g + bg_ref[...].astype(jnp.float32)
    if activation is not None:
        h = activation(h)
    o_ref[...] = (h * jax.nn.sigmoid(g)).astype(o_ref.dtype)


def _gated_dense_kernel_acc(x_ref, wh_ref, wg_ref, bh_ref, bg_ref, o_ref,
                            acc_h, acc_g, *, activation):
    """K-tiled path: two f32 VMEM accumulators, bias folded into the k==0 init."""
    k = pl.program_id(2)

    @pl.when(k == 0)
    def _():
        acc_h[...] = jnp.broadcast_to(bh_ref[...].astype(jnp.float32), acc_h.shape)
        acc_g[...] = jnp.broadcast_to(bg_ref[...].astype(jnp.float32), acc_g.shape)

    x = x_ref[...]
    acc_h[...] += jnp.dot(x, wh_ref[...], preferred_element_type=jnp.float32)
    acc_g[...] += jnp.dot(x, wg_ref[...], preferred_element_type=jnp.float32)

    @pl.when(k == pl.num_programs(2) - 1)
    def _():
        h = acc_h[...]
        g = acc_g[...]
        if activation is not None:
            h = activation(h)
        o_ref[...] = (h * jax.nn.sigmoid(g)).astype(o_ref.dtype)


# ---------------------------------------------------------------------------------
# Wrapper
# ---------------------------------------------------------------------------------
def gated_dense(x, wh, bh, wg, bg, activation=None):
    """x: (B, In); wh/wg: (In, Out) (transposed vs. PyTorch); bh/bg: (Out,). Returns (B, Out)."""
    B, In = x.shape
    Out = wh.shape[1]
    dtype = x.dtype
    itemsize = jnp.dtype(dtype).itemsize

    # ---- tile selection -----------------------------------------------------------
    # Output tile: lane dense (multiple of 128).
    Outp = _round_up(Out, 128)
    tn = next(t for t in (512, 256, 128) if t <= Outp and Outp % t == 0)
    nj = Outp // tn

    # Batch tile: as large as possible (<= 512) with minimal padding, rounded to the
    # sublane-packing granularity of the dtype (8 for 32-bit, 16 for 16-bit, 32 for 8-bit).
    min_tm = {4: 8, 2: 16, 1: 32}.get(itemsize, 8)
    ni = _ceil_div(B, 512)
    tm = _round_up(_ceil_div(B, ni), min_tm)
    Bp = tm * ni

    # v7x has 2 TensorCores: for tiny shapes make sure one "parallel" axis has extent >= 2.
    if ni == 1 and nj == 1 and tn >= 256:
        tn //= 2
        nj = Outp // tn

    # Contraction: keep In resident when it fits comfortably, otherwise tile by 1024
    # (lane aligned; safe on v7x's 64 MiB VMEM). Always pad K to a 128-lane multiple.
    if In <= 2048:
        Inp = _round_up(In, 128)
        tk = Inp
    else:
        tk = 1024
        Inp = _round_up(In, tk)
    nk = Inp // tk

    # ---- pad operands only when needed (no per-call repack for aligned shapes) -----
    x_p = x if (Bp == B and Inp == In) else jnp.pad(x, ((0, Bp - B), (0, Inp - In)))
    if Inp == In and Outp == Out:
        wh_p, wg_p = wh, wg
    else:
        wh_p = jnp.pad(wh, ((0, Inp - In), (0, Outp - Out)))
        wg_p = jnp.pad(wg, ((0, Inp - In), (0, Outp - Out)))
    bh_p = (bh if Outp == Out else jnp.pad(bh, (0, Outp - Out))).reshape(1, Outp)
    bg_p = (bg if Outp == Out else jnp.pad(bg, (0, Outp - Out))).reshape(1, Outp)

    # ---- BlockSpecs -----------------------------------------------------------------
    # Deepen the weight pipeline only where the weight DMA dominates the per-step compute
    # (small batch tile, K-tiled weights).
    w_kwargs = {}
    if nk > 1 and tm <= 64:
        w_kwargs = {"pipeline_mode": pl.Buffered(3)}

    x_spec = pl.BlockSpec((tm, tk), lambda i, j, k: (i, k))
    wh_spec = pl.BlockSpec((tk, tn), lambda i, j, k: (k, j), **w_kwargs)
    wg_spec = pl.BlockSpec((tk, tn), lambda i, j, k: (k, j), **w_kwargs)
    bh_spec = pl.BlockSpec((1, tn), lambda i, j, k: (0, j))
    bg_spec = pl.BlockSpec((1, tn), lambda i, j, k: (0, j))
    out_spec = pl.BlockSpec((tm, tn), lambda i, j, k: (i, j))

    if nk == 1:
        kernel = functools.partial(_gated_dense_kernel_noacc, activation=activation)
        scratch_shapes = []
    else:
        kernel = functools.partial(_gated_dense_kernel_acc, activation=activation)
        scratch_shapes = [
            pltpu.VMEM((tm, tn), jnp.float32),
            pltpu.VMEM((tm, tn), jnp.float32),
        ]

    cost = pl.CostEstimate(
        flops=4 * B * In * Out,                       # two (B,In)@(In,Out) matmuls
        transcendentals=B * Out,                      # sigmoid gate
        bytes_accessed=(
            x.size * x.dtype.itemsize
            + wh.size * wh.dtype.itemsize
            + wg.size * wg.dtype.itemsize
            + bh.size * bh.dtype.itemsize
            + bg.size * bg.dtype.itemsize
            + B * Out * itemsize
        ),
    )

    out_p = pl.pallas_call(
        kernel,
        out_shape=jax.ShapeDtypeStruct((Bp, Outp), dtype),
        grid_spec=pltpu.PrefetchScalarGridSpec(
            num_scalar_prefetch=0,
            grid=(ni, nj, nk),
            in_specs=[x_spec, wh_spec, wg_spec, bh_spec, bg_spec],
            out_specs=out_spec,
            scratch_shapes=scratch_shapes,
        ),
        compiler_params=pltpu.CompilerParams(
            dimension_semantics=("parallel", "parallel", "arbitrary"),
            vmem_limit_bytes=48 * 1024 * 1024,
        ),
        cost_estimate=cost,
    )(x_p, wh_p, wg_p, bh_p, bg_p)

    if Bp == B and Outp == Out:
        return out_p
    return out_p[:B, :Out]


# ---------------------------------------------------------------------------------
if __name__ == "__main__":
    key = jax.random.PRNGKey(0)
    k_x, k_wh, k_bh, k_wg, k_bg = jax.random.split(key, 5)

    batch, input_size, output_size = 8, 32, 64

    # Deterministic parameter init (mimics PyTorch Linear's uniform(-1/sqrt(in), 1/sqrt(in))).
    bound = 1.0 / jnp.sqrt(jnp.float32(input_size))
    x = jax.random.normal(k_x, (batch, input_size), dtype=jnp.float32)
    wh = jax.random.uniform(k_wh, (input_size, output_size), jnp.float32, -bound, bound)
    bh = jax.random.uniform(k_bh, (output_size,), jnp.float32, -bound, bound)
    wg = jax.random.uniform(k_wg, (input_size, output_size), jnp.float32, -bound, bound)
    bg = jax.random.uniform(k_bg, (output_size,), jnp.float32, -bound, bound)

    activation = None  # module default: activation=None

    out = gated_dense(x, wh, bh, wg, bg, activation=activation)
    out = jax.block_until_ready(out)

    # Pure-JAX reference check.
    h_ref = x @ wh + bh
    if activation is not None:
        h_ref = activation(h_ref)
    ref = h_ref * jax.nn.sigmoid(x @ wg + bg)
    assert out.shape == (batch, output_size)
    assert jnp.allclose(out, ref, atol=1e-5, rtol=1e-5)

    print("KERNEL_OK")
</pallas_src>

<mosaic_0001>
module attributes {stable_mosaic.version = 11 : i64} {
  func.func @_gated_dense_kernel_noacc(%arg0: i32, %arg1: i32, %arg2: i32, %arg3: memref<8x128xf32, #tpu.memory_space<vmem>>, %arg4: memref<128x128xf32, #tpu.memory_space<vmem>>, %arg5: memref<128x128xf32, #tpu.memory_space<vmem>>, %arg6: memref<1x128xf32, #tpu.memory_space<vmem>>, %arg7: memref<1x128xf32, #tpu.memory_space<vmem>>, %arg8: memref<8x128xf32, #tpu.memory_space<vmem>>) attributes {dimension_semantics = [#tpu.dimension_semantics<parallel>, #tpu.dimension_semantics<parallel>, #tpu.dimension_semantics<arbitrary>], iteration_bounds = array<i64: 1, 1, 1>, scalar_prefetch = 0 : i64, scratch_operands = 0 : i64, tpu.core_type = #tpu.core_type<tc>, window_params = [{transform_indices = @transform_0, window_bounds = array<i64: 8, 128>}, {transform_indices = @transform_1, window_bounds = array<i64: 128, 128>}, {transform_indices = @transform_2, window_bounds = array<i64: 128, 128>}, {transform_indices = @transform_3, window_bounds = array<i64: 1, 128>}, {transform_indices = @transform_4, window_bounds = array<i64: 1, 128>}, {transform_indices = @transform_5, window_bounds = array<i64: 8, 128>}]} {
    %c0 = arith.constant 0 : index
    %c0_0 = arith.constant 0 : index
    %0 = vector.load %arg3[%c0, %c0_0] : memref<8x128xf32, #tpu.memory_space<vmem>>, vector<8x128xf32>
    %c0_1 = arith.constant 0 : index
    %c0_2 = arith.constant 0 : index
    %1 = vector.load %arg4[%c0_1, %c0_2] : memref<128x128xf32, #tpu.memory_space<vmem>>, vector<128x128xf32>
    %cst = arith.constant dense<0.000000e+00> : vector<8x128xf32>
    %2 = tpu.matmul %0, %1, %cst {dimension_numbers = #tpu.dot_dimension_numbers<[1], [0], [0], [1], [0, 0, 1, 1], [], []>} : vector<8x128xf32>, vector<128x128xf32>, vector<8x128xf32> -> vector<8x128xf32>
    %c0_3 = arith.constant 0 : index
    %c0_4 = arith.constant 0 : index
    %3 = vector.load %arg5[%c0_3, %c0_4] : memref<128x128xf32, #tpu.memory_space<vmem>>, vector<128x128xf32>
    %cst_5 = arith.constant dense<0.000000e+00> : vector<8x128xf32>
    %4 = tpu.matmul %0, %3, %cst_5 {dimension_numbers = #tpu.dot_dimension_numbers<[1], [0], [0], [1], [0, 0, 1, 1], [], []>} : vector<8x128xf32>, vector<128x128xf32>, vector<8x128xf32> -> vector<8x128xf32>
    %c0_6 = arith.constant 0 : index
    %c0_7 = arith.constant 0 : index
    %5 = vector.load %arg6[%c0_6, %c0_7] : memref<1x128xf32, #tpu.memory_space<vmem>>, vector<1x128xf32>
    %6 = vector.broadcast %5 : vector<1x128xf32> to vector<8x128xf32>
    %7 = arith.addf %2, %6 : vector<8x128xf32>
    %c0_8 = arith.constant 0 : index
    %c0_9 = arith.constant 0 : index
    %8 = vector.load %arg7[%c0_8, %c0_9] : memref<1x128xf32, #tpu.memory_space<vmem>>, vector<1x128xf32>
    %9 = vector.broadcast %8 : vector<1x128xf32> to vector<8x128xf32>
    %10 = arith.addf %4, %9 : vector<8x128xf32>
    %11 = arith.negf %10 : vector<8x128xf32>
    %12 = math.exp %11 : vector<8x128xf32>
    %cst_10 = arith.constant 1.000000e+00 : f32
    %13 = vector.broadcast %cst_10 : f32 to vector<8x128xf32>
    %14 = arith.addf %13, %12 : vector<8x128xf32>
    %15 = arith.divf %13, %14 : vector<8x128xf32>
    %16 = arith.mulf %7, %15 : vector<8x128xf32>
    %c0_11 = arith.constant 0 : index
    %c0_12 = arith.constant 0 : index
    %17 = vector.load %arg8[%c0_11, %c0_12] : memref<8x128xf32, #tpu.memory_space<vmem>>, vector<8x128xf32>
    tpu.vector_store %arg8[%c0_11, %c0_12], %16 {strides = array<i32>} : memref<8x128xf32, #tpu.memory_space<vmem>>, vector<8x128xf32>,
    return
  }
  func.func @transform_0(%arg0: i32, %arg1: i32, %arg2: i32) -> (i32, i32) {
    %c0_i32 = arith.constant 0 : i32
    return %arg0, %arg2 : i32, i32
  }
  func.func @transform_1(%arg0: i32, %arg1: i32, %arg2: i32) -> (i32, i32) {
    %c0_i32 = arith.constant 0 : i32
    return %arg2, %arg1 : i32, i32
  }
  func.func @transform_2(%arg0: i32, %arg1: i32, %arg2: i32) -> (i32, i32) {
    %c0_i32 = arith.constant 0 : i32
    return %arg2, %arg1 : i32, i32
  }
  func.func @transform_3(%arg0: i32, %arg1: i32, %arg2: i32) -> (i32, i32) {
    %c0_i32 = arith.constant 0 : i32
    %c0_i32_0 = arith.constant 0 : i32
    return %c0_i32, %arg1 : i32, i32
  }
  func.func @transform_4(%arg0: i32, %arg1: i32, %arg2: i32) -> (i32, i32) {
    %c0_i32 = arith.constant 0 : i32
    %c0_i32_0 = arith.constant 0 : i32
    return %c0_i32, %arg1 : i32, i32
  }
  func.func @transform_5(%arg0: i32, %arg1: i32, %arg2: i32) -> (i32, i32) {
    %c0_i32 = arith.constant 0 : i32
    return %arg0, %arg1 : i32, i32
  }
}

</mosaic_0001>

<llo_original>
// kernel: tpu_custom_call.1
$region0: #{tpu_custom_call.1}
  #allocation0 [shape = 'u32[]', space=smem, size = 0x4, offset = 0x4, fixed_abs, tag = 'smem constant byte address 0x4 - core index']
  #allocation1 [shape = 'u32[144,128]{1,0:T(1,128)}', space=vmem, size = 0x12000, scoped, tag = 'internal scratch']
  %s0 = inlined_call_operand.hbm [shape: f32[8,128], index: 0, kind: input, shape index: {}]
  %s1 = inlined_call_operand.hbm [shape: f32[128,128], index: 1, kind: input, shape index: {}]
  %s2 = inlined_call_operand.hbm [shape: f32[128,128], index: 2, kind: input, shape index: {}]
  %s3 = inlined_call_operand.vmem [shape: f32[1,128], index: 3, kind: input, shape index: {}]
  %s4 = inlined_call_operand.vmem [shape: f32[1,128], index: 4, kind: input, shape index: {}]
  %s5 = inlined_call_operand.hbm [shape: f32[8,128], index: 5, kind: output, shape index: {}]
  %s6 = sld [smem:[#allocation0]]
  $region42: #{tpu_custom_call.1} parent=0
    _
  %s8 = ssub.s32 1, %s6
  %s9 = scalar_select 0, %s8, %s6
  $region1: #{tpu_custom_call.1} parent=0
    #allocation2 [shape = 'u8[4096]{0}', space=vmem, size = 0x1000, scoped, tag = 'input window, operand 0, single buffered']
    #allocation3 [shape = 's32[1]{0}', space=sflag, size = 0x4, scoped, tag = 'scoped memory for tpu_custom_call.1']
    #allocation4 [shape = 's32[1]{0}', space=sflag, size = 0x4, scoped, tag = 'scoped memory for tpu_custom_call.1']
    #allocation5 [shape = 'u8[65536]{0}', space=vmem, size = 0x10000, scoped, tag = 'input window, operand 1, single buffered']
    #allocation6 [shape = 's32[1]{0}', space=sflag, size = 0x4, scoped, tag = 'scoped memory for tpu_custom_call.1']
    #allocation7 [shape = 'u8[65536]{0}', space=vmem, size = 0x10000, scoped, tag = 'input window, operand 2, single buffered']
    #allocation8 [shape = 'u8[4096]{0}', space=vmem, size = 0x1000, scoped, tag = 'output window, operand 0, single buffered']
    %10 = vsyncpa [#allocation3], 0
    %11 = vsyncpa [#allocation6], 0
    %12 = vsyncpa [#allocation4], 0
    // Predicated region
    $region2: #{tpu_custom_call.1} parent=1 // pred_check
      _
    $region3: #{tpu_custom_call.1} parent=1 // pred_check_branch
      %14 = sbr.rel (0) target = $region5
    $region4: #{tpu_custom_call.1} parent=1 // pred_region
      %s16 = ssub.s32 128, 128
      %17 = vsyncadd [#allocation3], %s16
      %s19 = sshll.u32 [#allocation2], 4
      %s20 = int_to_ptr.vmem [resolvable:$true] %s19
      %22 = dma.hbm_to_vmem [thread:$0]  %s0, 128, %s20, [#allocation3]
    $region5: #{tpu_custom_call.1} parent=1 // pred_fallthru
      _
    // Predicated region
    $region6: #{tpu_custom_call.1} parent=1 // pred_check
      _
    $region7: #{tpu_custom_call.1} parent=1 // pred_check_branch
      %24 = sbr.rel (0) target = $region9
    $region8: #{tpu_custom_call.1} parent=1 // pred_region
      %s26 = ssub.s32 2048, 2048
      %27 = vsyncadd [#allocation6], %s26
      %s28 = sshll.u32 [#allocation5], 4
      %s29 = int_to_ptr.vmem [resolvable:$true] %s28
      %34 = dma.hbm_to_vmem [thread:$0]  %s1, 2048, %s29, [#allocation6], 128, 128, 8
    $region9: #{tpu_custom_call.1} parent=1 // pred_fallthru
      _
    // Predicated region
    $region10: #{tpu_custom_call.1} parent=1 // pred_check
      _
    $region11: #{tpu_custom_call.1} parent=1 // pred_check_branch
      %36 = sbr.rel (0) target = $region13
    $region12: #{tpu_custom_call.1} parent=1 // pred_region
      %s38 = ssub.s32 2048, 2048
      %39 = vsyncadd [#allocation6], %s38
      %s40 = sshll.u32 [#allocation7], 4
      %s41 = int_to_ptr.vmem [resolvable:$true] %s40
      %46 = dma.hbm_to_vmem [thread:$0]  %s2, 2048, %s41, [#allocation6], 128, 128, 8
    $region13: #{tpu_custom_call.1} parent=1 // pred_fallthru
      _
    // Predicated region
    $region14: #{tpu_custom_call.1} parent=1 // pred_check
      _
    $region15: #{tpu_custom_call.1} parent=1 // pred_check_branch
      %48 = sbr.rel (0) target = $region17
    $region16: #{tpu_custom_call.1} parent=1 // pred_region
      _
    $region17: #{tpu_custom_call.1} parent=1 // pred_fallthru
      _
    // Predicated region
    $region18: #{tpu_custom_call.1} parent=1 // pred_check
      _
    $region19: #{tpu_custom_call.1} parent=1 // pred_check_branch
      %50 = sbr.rel (0) target = $region21
    $region20: #{tpu_custom_call.1} parent=1 // pred_region
      _
    $region21: #{tpu_custom_call.1} parent=1 // pred_fallthru
      _
    // Predicated region
    $region22: #{tpu_custom_call.1} parent=1 // pred_check
      _
    $region23: #{tpu_custom_call.1} parent=1 // pred_check_branch
      %52 = sbr.rel (0) target = $region25
    $region24: #{tpu_custom_call.1} parent=1 // pred_region
      %53 = dma.done [#allocation3], 128
    $region25: #{tpu_custom_call.1} parent=1 // pred_fallthru
      _
    // Predicated region
    $region26: #{tpu_custom_call.1} parent=1 // pred_check
      _
    $region27: #{tpu_custom_call.1} parent=1 // pred_check_branch
      %55 = sbr.rel (0) target = $region29
    $region28: #{tpu_custom_call.1} parent=1 // pred_region
      %56 = dma.done [#allocation6], 2048
    $region29: #{tpu_custom_call.1} parent=1 // pred_fallthru
      _
    // Predicated region
    $region30: #{tpu_custom_call.1} parent=1 // pred_check
      _
    $region31: #{tpu_custom_call.1} parent=1 // pred_check_branch
      %58 = sbr.rel (0) target = $region33
    $region32: #{tpu_custom_call.1} parent=1 // pred_region
      %59 = dma.done [#allocation6], 2048
    $region33: #{tpu_custom_call.1} parent=1 // pred_fallthru
      _
    %v60 = vld [vmem:[#allocation2] sm:$0xff]
    %v61 = vld [vmem:[#allocation5] sm:$0xff]
    %v62 = vld [vmem:[#allocation5 + $0x8] sm:$0xff]
    %v63 = vld [vmem:[#allocation5 + $0x10] sm:$0xff]
    %v64 = vld [vmem:[#allocation5 + $0x18] sm:$0xff]
    %v65 = vld [vmem:[#allocation5 + $0x20] sm:$0xff]
    %v66 = vld [vmem:[#allocation5 + $0x28] sm:$0xff]
    %v67 = vld [vmem:[#allocation5 + $0x30] sm:$0xff]
    %v68 = vld [vmem:[#allocation5 + $0x38] sm:$0xff]
    %v69 = vld [vmem:[#allocation5 + $0x40] sm:$0xff]
    %v70 = vld [vmem:[#allocation5 + $0x48] sm:$0xff]
    %v71 = vld [vmem:[#allocation5 + $0x50] sm:$0xff]
    %v72 = vld [vmem:[#allocation5 + $0x58] sm:$0xff]
    %v73 = vld [vmem:[#allocation5 + $0x60] sm:$0xff]
    %v74 = vld [vmem:[#allocation5 + $0x68] sm:$0xff]
    %v75 = vld [vmem:[#allocation5 + $0x70] sm:$0xff]
    %v76 = vld [vmem:[#allocation5 + $0x78] sm:$0xff]
    %v77 = vld [vmem:[#allocation7] sm:$0xff]
    %v78 = vld [vmem:[#allocation7 + $0x8] sm:$0xff]
    %v79 = vld [vmem:[#allocation7 + $0x10] sm:$0xff]
    %v80 = vld [vmem:[#allocation7 + $0x18] sm:$0xff]
    %v81 = vld [vmem:[#allocation7 + $0x20] sm:$0xff]
    %v82 = vld [vmem:[#allocation7 + $0x28] sm:$0xff]
    %v83 = vld [vmem:[#allocation7 + $0x30] sm:$0xff]
    %v84 = vld [vmem:[#allocation7 + $0x38] sm:$0xff]
    %v85 = vld [vmem:[#allocation7 + $0x40] sm:$0xff]
    %v86 = vld [vmem:[#allocation7 + $0x48] sm:$0xff]
    %v87 = vld [vmem:[#allocation7 + $0x50] sm:$0xff]
    %v88 = vld [vmem:[#allocation7 + $0x58] sm:$0xff]
    %v89 = vld [vmem:[#allocation7 + $0x60] sm:$0xff]
    %v90 = vld [vmem:[#allocation7 + $0x68] sm:$0xff]
    %v91 = vld [vmem:[#allocation7 + $0x70] sm:$0xff]
    %v92 = vld [vmem:[#allocation7 + $0x78] sm:$0xff]
    %v93 = vld [vmem:[%s3] sm:$0x1]
    %v95 = vlaneseq
    %v96 = vshrl.u32 %v95, 7
    %v97 = vsub.s32 0, %v96
    %v98 = vrot.slane %v93, %v97
    %100 = vmatprep.subr.mxu0 0.0
    %101 = vmatpush1.msra.mxu0 %v76
    %102 = vmatprep.subr.mxu0 0.0
    %103 = vmatpush1.msra.mxu0 %v75
    %104 = vmatprep.subr.mxu0 0.0
    %105 = vmatpush1.msra.mxu0 %v74
    %106 = vmatprep.subr.mxu0 0.0
    %107 = vmatpush1.msra.mxu0 %v73
    %108 = vmatprep.subr.mxu0 0.0
    %109 = vmatpush1.msra.mxu0 %v72
    %110 = vmatprep.subr.mxu0 0.0
    %111 = vmatpush1.msra.mxu0 %v71
    %112 = vmatprep.subr.mxu0 0.0
    %113 = vmatpush1.msra.mxu0 %v70
    %114 = vmatprep.subr.mxu0 0.0
    %115 = vmatpush1.msra.mxu0 %v69
    %116 = vmatprep.subr.mxu0 0.0
    %117 = vmatpush1.msra.mxu0 %v68
    %118 = vmatprep.subr.mxu0 0.0
    %119 = vmatpush1.msra.mxu0 %v67
    %120 = vmatprep.subr.mxu0 0.0
    %121 = vmatpush1.msra.mxu0 %v66
    %122 = vmatprep.subr.mxu0 0.0
    %123 = vmatpush1.msra.mxu0 %v65
    %124 = vmatprep.subr.mxu0 0.0
    %125 = vmatpush1.msra.mxu0 %v64
    %126 = vmatprep.subr.mxu0 0.0
    %127 = vmatpush1.msra.mxu0 %v63
    %128 = vmatprep.subr.mxu0 0.0
    %129 = vmatpush1.msra.mxu0 %v62
    %130 = vmatprep.subr.mxu0 0.0
    %131 = vmatpush1.msra.mxu0 %v61
    %132 = vmatprep.subr.mxu0 0.0
    %133 = vmatpush2.msra.mxu0 0.0
    %134 = vmatprep.subr.mxu0 0.0
    %135 = vmatpush2.msra.mxu0 0.0
    %136 = vmatprep.subr.mxu0 0.0
    %137 = vmatpush2.msra.mxu0 0.0
    %138 = vmatprep.subr.mxu0 0.0
    %139 = vmatpush2.msra.mxu0 0.0
    %140 = vmatprep.subr.mxu0 0.0
    %141 = vmatpush2.msra.mxu0 0.0
    %142 = vmatprep.subr.mxu0 0.0
    %143 = vmatpush2.msra.mxu0 0.0
    %144 = vmatprep.subr.mxu0 0.0
    %145 = vmatpush2.msra.mxu0 0.0
    %146 = vmatprep.subr.mxu0 0.0
    %147 = vmatpush2.msra.mxu0 0.0
    %148 = vmatprep.subr.mxu0 0.0
    %149 = vmatpush2.msra.mxu0 0.0
    %150 = vmatprep.subr.mxu0 0.0
    %151 = vmatpush2.msra.mxu0 0.0
    %152 = vmatprep.subr.mxu0 0.0
    %153 = vmatpush2.msra.mxu0 0.0
    %154 = vmatprep.subr.mxu0 0.0
    %155 = vmatpush2.msra.mxu0 0.0
    %156 = vmatprep.subr.mxu0 0.0
    %157 = vmatpush2.msra.mxu0 0.0
    %158 = vmatprep.subr.mxu0 0.0
    %159 = vmatpush2.msra.mxu0 0.0
    %160 = vmatprep.subr.mxu0 0.0
    %161 = vmatpush2.msra.mxu0 0.0
    %162 = vmatprep.subr.mxu0 0.0
    %163 = vmatpush2.msra.mxu0 0.0
    %164 = vmatprep.mubr.f32.mxu0 0.0
    %165 = vmatmul.mubr.f32.gmra.mxu0 %v60
    %v166 = vpop.f32.mrf.mxu0
    %v167 = vadd.f32 %v98, %v166
    %v168 = vpop.f32.mrf.mxu0
    %169 = vdwg.mxu0
    %v170 = vld [vmem:[%s4] sm:$0x1]
    %v172 = vlaneseq
    %v173 = vshrl.u32 %v172, 7
    %v174 = vsub.s32 0, %v173
    %v175 = vrot.slane %v170, %v174
    %177 = vmatprep.subr.mxu0 0.0
    %178 = vmatpush1.msra.mxu0 %v92
    %179 = vmatprep.subr.mxu0 0.0
    %180 = vmatpush1.msra.mxu0 %v91
    %181 = vmatprep.subr.mxu0 0.0
    %182 = vmatpush1.msra.mxu0 %v90
    %183 = vmatprep.subr.mxu0 0.0
    %184 = vmatpush1.msra.mxu0 %v89
    %185 = vmatprep.subr.mxu0 0.0
    %186 = vmatpush1.msra.mxu0 %v88
    %187 = vmatprep.subr.mxu0 0.0
    %188 = vmatpush1.msra.mxu0 %v87
    %189 = vmatprep.subr.mxu0 0.0
    %190 = vmatpush1.msra.mxu0 %v86
    %191 = vmatprep.subr.mxu0 0.0
    %192 = vmatpush1.msra.mxu0 %v85
    %193 = vmatprep.subr.mxu0 0.0
    %194 = vmatpush1.msra.mxu0 %v84
    %195 = vmatprep.subr.mxu0 0.0
    %196 = vmatpush1.msra.mxu0 %v83
    %197 = vmatprep.subr.mxu0 0.0
    %198 = vmatpush1.msra.mxu0 %v82
    %199 = vmatprep.subr.mxu0 0.0
    %200 = vmatpush1.msra.mxu0 %v81
    %201 = vmatprep.subr.mxu0 0.0
    %202 = vmatpush1.msra.mxu0 %v80
    %203 = vmatprep.subr.mxu0 0.0
    %204 = vmatpush1.msra.mxu0 %v79
    %205 = vmatprep.subr.mxu0 0.0
    %206 = vmatpush1.msra.mxu0 %v78
    %207 = vmatprep.subr.mxu0 0.0
    %208 = vmatpush1.msra.mxu0 %v77
    %209 = vmatprep.subr.mxu0 0.0
    %210 = vmatpush2.msra.mxu0 0.0
    %211 = vmatprep.subr.mxu0 0.0
    %212 = vmatpush2.msra.mxu0 0.0
    %213 = vmatprep.subr.mxu0 0.0
    %214 = vmatpush2.msra.mxu0 0.0
    %215 = vmatprep.subr.mxu0 0.0
    %216 = vmatpush2.msra.mxu0 0.0
    %217 = vmatprep.subr.mxu0 0.0
    %218 = vmatpush2.msra.mxu0 0.0
    %219 = vmatprep.subr.mxu0 0.0
    %220 = vmatpush2.msra.mxu0 0.0
    %221 = vmatprep.subr.mxu0 0.0
    %222 = vmatpush2.msra.mxu0 0.0
    %223 = vmatprep.subr.mxu0 0.0
    %224 = vmatpush2.msra.mxu0 0.0
    %225 = vmatprep.subr.mxu0 0.0
    %226 = vmatpush2.msra.mxu0 0.0
    %227 = vmatprep.subr.mxu0 0.0
    %228 = vmatpush2.msra.mxu0 0.0
    %229 = vmatprep.subr.mxu0 0.0
    %230 = vmatpush2.msra.mxu0 0.0
    %231 = vmatprep.subr.mxu0 0.0
    %232 = vmatpush2.msra.mxu0 0.0
    %233 = vmatprep.subr.mxu0 0.0
    %234 = vmatpush2.msra.mxu0 0.0
    %235 = vmatprep.subr.mxu0 0.0
    %236 = vmatpush2.msra.mxu0 0.0
    %237 = vmatprep.subr.mxu0 0.0
    %238 = vmatpush2.msra.mxu0 0.0
    %239 = vmatprep.subr.mxu0 0.0
    %240 = vmatpush2.msra.mxu0 0.0
    %241 = vmatprep.mubr.f32.mxu0 0.0
    %242 = vmatmul.mubr.f32.gmra.mxu0 %v60
    %v243 = vpop.f32.mrf.mxu0
    %v244 = vadd.f32 %v175, %v243
    %v245 = vpop.f32.mrf.mxu0
    %246 = vdwg.mxu0
    %v247 = vxor.u32 %v244, 2147483648
    %v248 = vmul.f32 %v247, 1.442695
    %v249 = vpow.pop %v248
    %v250 = vadd.f32 %v249, 1.0
    %v251 = vrcp.pop %v250
    %v252 = vmul.f32 1.0, %v251
    %v253 = vmul.f32 %v167, %v252
    %254 = vst [vmem:[#allocation8] sm:$0xff] %v253
    // Predicated region
    $region34: #{tpu_custom_call.1} parent=1 // pred_check
      _
    $region35: #{tpu_custom_call.1} parent=1 // pred_check_branch
      %256 = sbr.rel (0) target = $region37
    $region36: #{tpu_custom_call.1} parent=1 // pred_region
      %s258 = ssub.s32 128, 128
      %259 = vsyncadd [#allocation4], %s258
      %s261 = sshll.u32 [#allocation8], 4
      %s262 = int_to_ptr.vmem [resolvable:$true] %s261
      %264 = dma.vmem_to_hbm [thread:$0]  %s262, 128, %s5, [#allocation4]
    $region37: #{tpu_custom_call.1} parent=1 // pred_fallthru
      _
    // Predicated region
    $region38: #{tpu_custom_call.1} parent=1 // pred_check
      _
    $region39: #{tpu_custom_call.1} parent=1 // pred_check_branch
      %266 = sbr.rel (0) target = $region41
    $region40: #{tpu_custom_call.1} parent=1 // pred_region
      %267 = dma.done [#allocation4], 128
    $region41: #{tpu_custom_call.1} parent=1 // pred_fallthru
      _
    %268 = vsyncpa [#allocation3], 1
    %269 = vsyncpa [#allocation6], 1
    %270 = vsyncpa [#allocation4], 1

</llo_original>
